<compile_context>
chip_gen: v7x
topology: tpu7x:2x2x1
jax: 0.10.0
libtpu: 0.0.40
codegen_flags: <defaults>
</compile_context>

<pallas_src>
import math
import functools

import jax
import jax.numpy as jnp
from jax import lax
from jax.experimental import pallas as pl
from jax.experimental.pallas import tpu as pltpu

D_MODEL = 32
N_LAYERS = 6
DROPOUT_P = 0.1
LN_EPS = 1e-5            # torch.nn.LayerNorm default
LANES = 128
PACK = LANES // D_MODEL  # 4 logical rows folded into one 128-lane row
DEFAULT_TM = 512         # packed-row tile (multiple of 8); 512*128*4B = 256 KiB/buf


def _mix_int32(h):
    """murmur3-style finalizer on int32 lanes (wrapping arithmetic, logical shifts)."""
    h = h ^ lax.shift_right_logical(h, 16)
    h = h * jnp.int32(-2048144789)      # 0x85ebca6b
    h = h ^ lax.shift_right_logical(h, 13)
    h = h * jnp.int32(-1028477387)      # 0xc2b2ae35
    h = h ^ lax.shift_right_logical(h, 16)
    return h


def connection_kernel(seed_ref,           # scalar-prefetch: (1,) int32 in SMEM
                      x_ref,              # (tm, 128) f32, 4 logical rows per row
                      w_ref,              # (128, 128) f32  block_diag(W, W, W, W)
                      b_ref,              # (1, 128) f32    tiled sublayer bias
                      g_ref,              # (1, 128) f32    tiled LayerNorm weight
                      be_ref,             # (1, 128) f32    tiled LayerNorm bias
                      mseg_ref,           # (128, 128) f32  segment-mean matrix
                      o_ref,              # (tm, 128) f32
                      *, apply_dropout: bool, tm: int):
    x = x_ref[...]
    w = w_ref[...]
    bias = b_ref[...]
    gamma = g_ref[...]
    beta = be_ref[...]
    mseg = mseg_ref[...]

    # sublayer: layer(x) = x @ W + b   (lane-dense 128-wide MXU contraction)
    y = jnp.dot(x, w, preferred_element_type=jnp.float32) + bias

    # residual add
    z = x + y

    # LayerNorm over each 32-lane segment; segment mean/var via MXU matmul
    mean = jnp.dot(z, mseg, preferred_element_type=jnp.float32)
    centered = z - mean
    var = jnp.dot(centered * centered, mseg, preferred_element_type=jnp.float32)
    out = centered * lax.rsqrt(var + LN_EPS) * gamma + beta

    if apply_dropout:
        # Inverted dropout, keep prob (1-p).  Counter-based hash keyed on the
        # GLOBAL element index (tile offset folded in via program_id), so masks
        # differ across tiles and layers.  Not bit-identical to torch's RNG.
        row = lax.broadcasted_iota(jnp.int32, (tm, LANES), 0)
        col = lax.broadcasted_iota(jnp.int32, (tm, LANES), 1)
        grow = row + pl.program_id(0) * tm
        idx = grow * jnp.int32(LANES) + col
        seed_mix = seed_ref[0] * jnp.int32(-1640531535)      # 0x9E3779B1
        h = _mix_int32(idx ^ seed_mix)
        keep = (h & jnp.int32(0x7FFFFFFF)) >= jnp.int32(int(DROPOUT_P * (2 ** 31)))
        out = jnp.where(keep, out, 0.0) * jnp.float32(1.0 / (1.0 - DROPOUT_P))

    o_ref[...] = out


def connection_forward(x, w, b, gamma, beta, seed, *, training=True, tm=DEFAULT_TM):
    """x: (B, S, D) f32 -> dropout(LayerNorm(x + x @ W + b)), shape (B, S, D)."""
    B, S, D = x.shape
    assert D == D_MODEL
    N = B * S

    # ---- host-side lane-dense repack: fold PACK logical rows into 128 lanes ----
    np_rows = pl.cdiv(N, PACK)
    tm_eff = min(tm, max(8, ((np_rows + 7) // 8) * 8))     # tile multiple of 8
    np_pad = ((np_rows + tm_eff - 1) // tm_eff) * tm_eff   # pad to full tiles
    n_pad = np_pad * PACK

    x2 = x.reshape(N, D)
    if n_pad != N:
        x2 = jnp.pad(x2, ((0, n_pad - N), (0, 0)))
    xp = x2.reshape(np_pad, LANES)                          # (Np, 128) lane-dense

    wb = jnp.kron(jnp.eye(PACK, dtype=w.dtype), w)          # (128,128) block-diag
    bt = jnp.tile(b.reshape(1, D), (1, PACK))               # (1,128)
    gt = jnp.tile(gamma.reshape(1, D), (1, PACK))
    bet = jnp.tile(beta.reshape(1, D), (1, PACK))
    seg = jnp.kron(jnp.eye(PACK, dtype=jnp.float32),
                   jnp.full((D, D), 1.0 / D, dtype=jnp.float32))  # segment mean

    seed_arr = jnp.asarray([seed], dtype=jnp.int32)
    grid = (np_pad // tm_eff,)

    kernel = functools.partial(connection_kernel, apply_dropout=training, tm=tm_eff)

    cost = pl.CostEstimate(
        flops=2 * np_pad * LANES * LANES * 3,               # main + 2 segment matmuls
        transcendentals=np_pad * PACK,                      # one rsqrt per logical row
        bytes_accessed=4 * (2 * np_pad * LANES + 2 * LANES * LANES + 3 * LANES),
    )

    out = pl.pallas_call(
        kernel,
        out_shape=jax.ShapeDtypeStruct((np_pad, LANES), jnp.float32),
        grid_spec=pltpu.PrefetchScalarGridSpec(
            num_scalar_prefetch=1,
            grid=grid,
            in_specs=[
                pl.BlockSpec((tm_eff, LANES), lambda i, seed: (i, 0)),  # x (tiled)
                pl.BlockSpec((LANES, LANES), lambda i, seed: (0, 0)),   # block-diag W
                pl.BlockSpec((1, LANES), lambda i, seed: (0, 0)),       # bias
                pl.BlockSpec((1, LANES), lambda i, seed: (0, 0)),       # gamma
                pl.BlockSpec((1, LANES), lambda i, seed: (0, 0)),       # beta
                pl.BlockSpec((LANES, LANES), lambda i, seed: (0, 0)),   # segment mat
            ],
            out_specs=pl.BlockSpec((tm_eff, LANES), lambda i, seed: (i, 0)),
        ),
        compiler_params=pltpu.CompilerParams(
            dimension_semantics=("parallel",),        # rows independent -> megacore
            vmem_limit_bytes=64 * 1024 * 1024),
        cost_estimate=cost,
    )(seed_arr, xp, wb, bt, gt, bet, seg)

    out = out.reshape(n_pad, D)[:N]
    return out.reshape(B, S, D)


def encoder_forward(x, mask, params, seed, *, training=True):
    """Encoder: apply the (cloned) layer N_LAYERS times.  `mask` unused (see TODO)."""
    del mask  # TODO(synk): attention mask has no consumer without the attention sublayer.
    for layer_idx, (w, b, gamma, beta) in enumerate(params):
        x = connection_forward(x, w, b, gamma, beta,
                               seed=seed + layer_idx, training=training)
    return x


if __name__ == "__main__":
    key = jax.random.PRNGKey(0)
    k_x, k_w, k_b = jax.random.split(key, 3)

    B, S, D = 2, 8, D_MODEL

    # Input activations (e.g. Embedding(vocab, 32) * sqrt(32)).
    x = jax.random.normal(k_x, (B, S, D), dtype=jnp.float32) * math.sqrt(D)
    # Attention mask as in the reference forward signature (currently unused).
    mask = jnp.ones((B, 1, S), dtype=jnp.int32)

    # Deterministic sublayer (Linear) + LayerNorm parameters.  clone_layer
    # deep-copies, so all 6 layers share identical initial parameters.
    w = jax.random.normal(k_w, (D, D), dtype=jnp.float32) * (1.0 / math.sqrt(D))
    b = jax.random.normal(k_b, (D,), dtype=jnp.float32) * 0.01
    gamma = jnp.ones((D,), dtype=jnp.float32)
    beta = jnp.zeros((D,), dtype=jnp.float32)
    params = [(w, b, gamma, beta)] * N_LAYERS

    out = encoder_forward(x, mask, params, seed=0, training=True)
    jax.block_until_ready(out)

    assert out.shape == (B, S, D)
    assert out.dtype == jnp.float32
    assert bool(jnp.all(jnp.isfinite(out)))
    print("KERNEL_OK")
</pallas_src>

<mosaic_0001>
module attributes {stable_mosaic.version = 11 : i64} {
  func.func @connection_kernel(%arg0: i32, %arg1: memref<1xi32, #tpu.memory_space<smem>>, %arg2: memref<8x128xf32, #tpu.memory_space<vmem>>, %arg3: memref<128x128xf32, #tpu.memory_space<vmem>>, %arg4: memref<1x128xf32, #tpu.memory_space<vmem>>, %arg5: memref<1x128xf32, #tpu.memory_space<vmem>>, %arg6: memref<1x128xf32, #tpu.memory_space<vmem>>, %arg7: memref<128x128xf32, #tpu.memory_space<vmem>>, %arg8: memref<8x128xf32, #tpu.memory_space<vmem>>) attributes {dimension_semantics = [#tpu.dimension_semantics<parallel>], iteration_bounds = array<i64: 1>, scalar_prefetch = 1 : i64, scratch_operands = 0 : i64, tpu.core_type = #tpu.core_type<tc>, window_params = [{transform_indices = @transform_0, window_bounds = array<i64: 8, 128>}, {pipeline_mode = #tpu.pipeline_mode<synchronous>, transform_indices = @transform_1, window_bounds = array<i64: 128, 128>}, {pipeline_mode = #tpu.pipeline_mode<synchronous>, transform_indices = @transform_2, window_bounds = array<i64: 1, 128>}, {pipeline_mode = #tpu.pipeline_mode<synchronous>, transform_indices = @transform_3, window_bounds = array<i64: 1, 128>}, {pipeline_mode = #tpu.pipeline_mode<synchronous>, transform_indices = @transform_4, window_bounds = array<i64: 1, 128>}, {pipeline_mode = #tpu.pipeline_mode<synchronous>, transform_indices = @transform_5, window_bounds = array<i64: 128, 128>}, {transform_indices = @transform_6, window_bounds = array<i64: 8, 128>}]} {
    %c0 = arith.constant 0 : index
    %c0_0 = arith.constant 0 : index
    %0 = vector.load %arg2[%c0, %c0_0] : memref<8x128xf32, #tpu.memory_space<vmem>>, vector<8x128xf32>
    %c0_1 = arith.constant 0 : index
    %c0_2 = arith.constant 0 : index
    %1 = vector.load %arg3[%c0_1, %c0_2] : memref<128x128xf32, #tpu.memory_space<vmem>>, vector<128x128xf32>
    %c0_3 = arith.constant 0 : index
    %c0_4 = arith.constant 0 : index
    %2 = vector.load %arg4[%c0_3, %c0_4] : memref<1x128xf32, #tpu.memory_space<vmem>>, vector<1x128xf32>
    %c0_5 = arith.constant 0 : index
    %c0_6 = arith.constant 0 : index
    %3 = vector.load %arg5[%c0_5, %c0_6] : memref<1x128xf32, #tpu.memory_space<vmem>>, vector<1x128xf32>
    %c0_7 = arith.constant 0 : index
    %c0_8 = arith.constant 0 : index
    %4 = vector.load %arg6[%c0_7, %c0_8] : memref<1x128xf32, #tpu.memory_space<vmem>>, vector<1x128xf32>
    %c0_9 = arith.constant 0 : index
    %c0_10 = arith.constant 0 : index
    %5 = vector.load %arg7[%c0_9, %c0_10] : memref<128x128xf32, #tpu.memory_space<vmem>>, vector<128x128xf32>
    %cst = arith.constant dense<0.000000e+00> : vector<8x128xf32>
    %6 = tpu.matmul %0, %1, %cst {dimension_numbers = #tpu.dot_dimension_numbers<[1], [0], [0], [1], [0, 0, 1, 1], [], []>} : vector<8x128xf32>, vector<128x128xf32>, vector<8x128xf32> -> vector<8x128xf32>
    %7 = vector.broadcast %2 : vector<1x128xf32> to vector<8x128xf32>
    %8 = arith.addf %6, %7 : vector<8x128xf32>
    %9 = arith.addf %0, %8 : vector<8x128xf32>
    %cst_11 = arith.constant dense<0.000000e+00> : vector<8x128xf32>
    %10 = tpu.matmul %9, %5, %cst_11 {dimension_numbers = #tpu.dot_dimension_numbers<[1], [0], [0], [1], [0, 0, 1, 1], [], []>} : vector<8x128xf32>, vector<128x128xf32>, vector<8x128xf32> -> vector<8x128xf32>
    %11 = arith.subf %9, %10 : vector<8x128xf32>
    %12 = arith.mulf %11, %11 : vector<8x128xf32>
    %cst_12 = arith.constant dense<0.000000e+00> : vector<8x128xf32>
    %13 = tpu.matmul %12, %5, %cst_12 {dimension_numbers = #tpu.dot_dimension_numbers<[1], [0], [0], [1], [0, 0, 1, 1], [], []>} : vector<8x128xf32>, vector<128x128xf32>, vector<8x128xf32> -> vector<8x128xf32>
    %cst_13 = arith.constant 9.99999974E-6 : f32
    %14 = vector.broadcast %cst_13 : f32 to vector<8x128xf32>
    %15 = arith.addf %13, %14 : vector<8x128xf32>
    %16 = math.rsqrt %15 : vector<8x128xf32>
    %17 = arith.mulf %11, %16 : vector<8x128xf32>
    %18 = vector.broadcast %3 : vector<1x128xf32> to vector<8x128xf32>
    %19 = arith.mulf %17, %18 : vector<8x128xf32>
    %20 = vector.broadcast %4 : vector<1x128xf32> to vector<8x128xf32>
    %21 = arith.addf %19, %20 : vector<8x128xf32>
    %22 = tpu.iota {dimensions = array<i32: 0>} : vector<8x128xi32>
    %23 = tpu.iota {dimensions = array<i32: 1>} : vector<8x128xi32>
    %c8_i32 = arith.constant 8 : i32
    %24 = arith.muli %arg0, %c8_i32 : i32
    %25 = vector.broadcast %24 : i32 to vector<8x128xi32>
    %26 = arith.addi %22, %25 : vector<8x128xi32>
    %c128_i32 = arith.constant 128 : i32
    %27 = vector.broadcast %c128_i32 : i32 to vector<8x128xi32>
    %28 = arith.muli %26, %27 : vector<8x128xi32>
    %29 = arith.addi %28, %23 : vector<8x128xi32>
    %c0_14 = arith.constant 0 : index
    %30 = memref.load %arg1[%c0_14] : memref<1xi32, #tpu.memory_space<smem>>
    %c-1640531535_i32 = arith.constant -1640531535 : i32
    %31 = arith.muli %30, %c-1640531535_i32 : i32
    %32 = vector.broadcast %31 : i32 to vector<8x128xi32>
    %33 = arith.xori %29, %32 : vector<8x128xi32>
    %c16_i32 = arith.constant 16 : i32
    %34 = vector.broadcast %c16_i32 : i32 to vector<8x128xi32>
    %35 = arith.shrui %33, %34 : vector<8x128xi32>
    %36 = arith.xori %33, %35 : vector<8x128xi32>
    %c-2048144789_i32 = arith.constant -2048144789 : i32
    %37 = vector.broadcast %c-2048144789_i32 : i32 to vector<8x128xi32>
    %38 = arith.muli %36, %37 : vector<8x128xi32>
    %c13_i32 = arith.constant 13 : i32
    %39 = vector.broadcast %c13_i32 : i32 to vector<8x128xi32>
    %40 = arith.shrui %38, %39 : vector<8x128xi32>
    %41 = arith.xori %38, %40 : vector<8x128xi32>
    %c-1028477387_i32 = arith.constant -1028477387 : i32
    %42 = vector.broadcast %c-1028477387_i32 : i32 to vector<8x128xi32>
    %43 = arith.muli %41, %42 : vector<8x128xi32>
    %c16_i32_15 = arith.constant 16 : i32
    %44 = vector.broadcast %c16_i32_15 : i32 to vector<8x128xi32>
    %45 = arith.shrui %43, %44 : vector<8x128xi32>
    %46 = arith.xori %43, %45 : vector<8x128xi32>
    %c2147483647_i32 = arith.constant 2147483647 : i32
    %47 = vector.broadcast %c2147483647_i32 : i32 to vector<8x128xi32>
    %48 = arith.andi %46, %47 : vector<8x128xi32>
    %c214748364_i32 = arith.constant 214748364 : i32
    %49 = vector.broadcast %c214748364_i32 : i32 to vector<8x128xi32>
    %50 = arith.cmpi sge, %48, %49 : vector<8x128xi32>
    %cst_16 = arith.constant 0.000000e+00 : f32
    %51 = vector.broadcast %cst_16 : f32 to vector<8x128xf32>
    %52 = arith.select %50, %21, %51 : vector<8x128xi1>, vector<8x128xf32>
    %cst_17 = arith.constant 1.11111116 : f32
    %53 = vector.broadcast %cst_17 : f32 to vector<8x128xf32>
    %54 = arith.mulf %52, %53 : vector<8x128xf32>
    %c0_18 = arith.constant 0 : index
    %c0_19 = arith.constant 0 : index
    %55 = vector.load %arg8[%c0_18, %c0_19] : memref<8x128xf32, #tpu.memory_space<vmem>>, vector<8x128xf32>
    tpu.vector_store %arg8[%c0_18, %c0_19], %54 {strides = array<i32>} : memref<8x128xf32, #tpu.memory_space<vmem>>, vector<8x128xf32>,
    return
  }
  func.func @transform_0(%arg0: i32, %arg1: memref<1xi32, #tpu.memory_space<smem>>) -> (i32, i32) {
    %c0_i32 = arith.constant 0 : i32
    %c0_i32_0 = arith.constant 0 : i32
    return %arg0, %c0_i32 : i32, i32
  }
  func.func @transform_1(%arg0: i32, %arg1: memref<1xi32, #tpu.memory_space<smem>>) -> (i32, i32) {
    %c0_i32 = arith.constant 0 : i32
    %c0_i32_0 = arith.constant 0 : i32
    %c0_i32_1 = arith.constant 0 : i32
    return %c0_i32, %c0_i32_0 : i32, i32
  }
  func.func @transform_2(%arg0: i32, %arg1: memref<1xi32, #tpu.memory_space<smem>>) -> (i32, i32) {
    %c0_i32 = arith.constant 0 : i32
    %c0_i32_0 = arith.constant 0 : i32
    %c0_i32_1 = arith.constant 0 : i32
    return %c0_i32, %c0_i32_0 : i32, i32
  }
  func.func @transform_3(%arg0: i32, %arg1: memref<1xi32, #tpu.memory_space<smem>>) -> (i32, i32) {
    %c0_i32 = arith.constant 0 : i32
    %c0_i32_0 = arith.constant 0 : i32
    %c0_i32_1 = arith.constant 0 : i32
    return %c0_i32, %c0_i32_0 : i32, i32
  }
  func.func @transform_4(%arg0: i32, %arg1: memref<1xi32, #tpu.memory_space<smem>>) -> (i32, i32) {
    %c0_i32 = arith.constant 0 : i32
    %c0_i32_0 = arith.constant 0 : i32
    %c0_i32_1 = arith.constant 0 : i32
    return %c0_i32, %c0_i32_0 : i32, i32
  }
  func.func @transform_5(%arg0: i32, %arg1: memref<1xi32, #tpu.memory_space<smem>>) -> (i32, i32) {
    %c0_i32 = arith.constant 0 : i32
    %c0_i32_0 = arith.constant 0 : i32
    %c0_i32_1 = arith.constant 0 : i32
    return %c0_i32, %c0_i32_0 : i32, i32
  }
  func.func @transform_6(%arg0: i32, %arg1: memref<1xi32, #tpu.memory_space<smem>>) -> (i32, i32) {
    %c0_i32 = arith.constant 0 : i32
    %c0_i32_0 = arith.constant 0 : i32
    return %arg0, %c0_i32 : i32, i32
  }
}

</mosaic_0001>

<llo_original>
// kernel: tpu_custom_call.1
$region0: #{tpu_custom_call.1}
  #allocation0 [shape = 'u32[]', space=smem, size = 0x4, offset = 0x4, fixed_abs, tag = 'smem constant byte address 0x4 - core index']
  #allocation1 [shape = 'u32[144,128]{1,0:T(1,128)}', space=vmem, size = 0x12000, scoped, tag = 'internal scratch']
  #allocation2 [shape = 's32[1]{0}', space=sflag, size = 0x4, scoped, tag = 'scoped memory for tpu_custom_call.1']
  #allocation3 [shape = 's32[1]{0:T(128)S(6)}', space=smem, size = 0x200, scoped, tag = 'prefetched SMEM operand 0']
  %s0 = inlined_call_operand.<no memory space> [shape: s32[1], index: 0, kind: input, shape index: {}]
  %s1 = inlined_call_operand.hbm [shape: f32[8,128], index: 1, kind: input, shape index: {}]
  %s2 = inlined_call_operand.hbm [shape: f32[128,128], index: 2, kind: input, shape index: {}]
  %s3 = inlined_call_operand.hbm [shape: f32[1,128], index: 3, kind: input, shape index: {}]
  %s4 = inlined_call_operand.hbm [shape: f32[1,128], index: 4, kind: input, shape index: {}]
  %s5 = inlined_call_operand.hbm [shape: f32[1,128], index: 5, kind: input, shape index: {}]
  %s6 = inlined_call_operand.hbm [shape: f32[128,128], index: 6, kind: input, shape index: {}]
  %s7 = inlined_call_operand.hbm [shape: f32[8,128], index: 7, kind: output, shape index: {}]
  %s8 = sld [smem:[#allocation0]]
  $region58: #{tpu_custom_call.1} parent=0
    _
  %s10 = ssub.s32 1, %s8
  %s11 = scalar_select 0, %s10, %s8
  %12 = sst [smem:[#allocation3]] %s0
  $region1: #{tpu_custom_call.1} parent=0
    #allocation4 [shape = 'u8[4096]{0}', space=vmem, size = 0x1000, scoped, tag = 'input window, operand 1, single buffered']
    #allocation5 [shape = 's32[1]{0}', space=sflag, size = 0x4, scoped, tag = 'scoped memory for tpu_custom_call.1']
    #allocation6 [shape = 's32[1]{0}', space=sflag, size = 0x4, scoped, tag = 'scoped memory for tpu_custom_call.1']
    #allocation7 [shape = 'u8[65536]{0}', space=vmem, size = 0x10000, scoped, tag = 'input window, operand 2, single buffered']
    #allocation8 [shape = 's32[1]{0}', space=sflag, size = 0x4, scoped, tag = 'scoped memory for tpu_custom_call.1']
    #allocation9 [shape = 'u8[512]{0}', space=vmem, size = 0x400, scoped, tag = 'input window, operand 3, single buffered']
    #allocation10 [shape = 'u8[512]{0}', space=vmem, size = 0x400, scoped, tag = 'input window, operand 4, single buffered']
    #allocation11 [shape = 's32[1]{0}', space=sflag, size = 0x4, scoped, tag = 'scoped memory for tpu_custom_call.1']
    #allocation12 [shape = 'u8[512]{0}', space=vmem, size = 0x400, scoped, tag = 'input window, operand 5, single buffered']
    #allocation13 [shape = 'u8[65536]{0}', space=vmem, size = 0x10000, scoped, tag = 'input window, operand 6, single buffered']
    #allocation14 [shape = 's32[1]{0}', space=sflag, size = 0x4, scoped, tag = 'scoped memory for tpu_custom_call.1']
    #allocation15 [shape = 'u8[4096]{0}', space=vmem, size = 0x1000, scoped, tag = 'output window, operand 0, single buffered']
    %13 = vsyncpa [#allocation5], 0
    %14 = vsyncpa [#allocation8], 0
    %15 = vsyncpa [#allocation11], 0
    %16 = vsyncpa [#allocation14], 0
    %17 = vsyncpa [#allocation6], 0
    // Predicated region
    $region2: #{tpu_custom_call.1} parent=1 // pred_check
      _
    $region3: #{tpu_custom_call.1} parent=1 // pred_check_branch
      %19 = sbr.rel (0) target = $region5
    $region4: #{tpu_custom_call.1} parent=1 // pred_region
      %s21 = ssub.s32 128, 128
      %22 = vsyncadd [#allocation5], %s21
      %s24 = sshll.u32 [#allocation4], 4
      %s25 = int_to_ptr.vmem [resolvable:$true] %s24
      %27 = dma.hbm_to_vmem [thread:$0]  %s1, 128, %s25, [#allocation5]
    $region5: #{tpu_custom_call.1} parent=1 // pred_fallthru
      _
    // Predicated region
    $region6: #{tpu_custom_call.1} parent=1 // pred_check
      _
    $region7: #{tpu_custom_call.1} parent=1 // pred_check_branch
      %29 = sbr.rel (0) target = $region9
    $region8: #{tpu_custom_call.1} parent=1 // pred_region
      %s31 = ssub.s32 2048, 2048
      %32 = vsyncadd [#allocation8], %s31
      %s33 = sshll.u32 [#allocation7], 4
      %s34 = int_to_ptr.vmem [resolvable:$true] %s33
      %39 = dma.hbm_to_vmem [thread:$0]  %s2, 2048, %s34, [#allocation8], 128, 128, 8
    $region9: #{tpu_custom_call.1} parent=1 // pred_fallthru
      _
    // Predicated region
    $region10: #{tpu_custom_call.1} parent=1 // pred_check
      _
    $region11: #{tpu_custom_call.1} parent=1 // pred_check_branch
      %41 = sbr.rel (0) target = $region13
    $region12: #{tpu_custom_call.1} parent=1 // pred_region
      %s43 = ssub.s32 16, 16
      %44 = vsyncadd [#allocation8], %s43
      %s46 = sshll.u32 [#allocation9], 4
      %s47 = int_to_ptr.vmem [resolvable:$true] %s46
      %49 = dma.hbm_to_vmem [thread:$0]  %s3, 16, %s47, [#allocation8]
    $region13: #{tpu_custom_call.1} parent=1 // pred_fallthru
      _
    // Predicated region
    $region14: #{tpu_custom_call.1} parent=1 // pred_check
      _
    $region15: #{tpu_custom_call.1} parent=1 // pred_check_branch
      %51 = sbr.rel (0) target = $region17
    $region16: #{tpu_custom_call.1} parent=1 // pred_region
      %s53 = ssub.s32 16, 16
      %54 = vsyncadd [#allocation11], %s53
      %s56 = sshll.u32 [#allocation10], 4
      %s57 = int_to_ptr.vmem [resolvable:$true] %s56
      %59 = dma.hbm_to_vmem [thread:$0]  %s4, 16, %s57, [#allocation11]
    $region17: #{tpu_custom_call.1} parent=1 // pred_fallthru
      _
    // Predicated region
    $region18: #{tpu_custom_call.1} parent=1 // pred_check
      _
    $region19: #{tpu_custom_call.1} parent=1 // pred_check_branch
      %61 = sbr.rel (0) target = $region21
    $region20: #{tpu_custom_call.1} parent=1 // pred_region
      %s63 = ssub.s32 16, 16
      %64 = vsyncadd [#allocation11], %s63
      %s66 = sshll.u32 [#allocation12], 4
      %s67 = int_to_ptr.vmem [resolvable:$true] %s66
      %69 = dma.hbm_to_vmem [thread:$0]  %s5, 16, %s67, [#allocation11]
    $region21: #{tpu_custom_call.1} parent=1 // pred_fallthru
      _
    // Predicated region
    $region22: #{tpu_custom_call.1} parent=1 // pred_check
      _
    $region23: #{tpu_custom_call.1} parent=1 // pred_check_branch
      %71 = sbr.rel (0) target = $region25
    $region24: #{tpu_custom_call.1} parent=1 // pred_region
      %s73 = ssub.s32 2048, 2048
      %74 = vsyncadd [#allocation14], %s73
      %s75 = sshll.u32 [#allocation13], 4
      %s76 = int_to_ptr.vmem [resolvable:$true] %s75
      %81 = dma.hbm_to_vmem [thread:$0]  %s6, 2048, %s76, [#allocation14], 128, 128, 8
    $region25: #{tpu_custom_call.1} parent=1 // pred_fallthru
      _
    // Predicated region
    $region26: #{tpu_custom_call.1} parent=1 // pred_check
      _
    $region27: #{tpu_custom_call.1} parent=1 // pred_check_branch
      %83 = sbr.rel (0) target = $region29
    $region28: #{tpu_custom_call.1} parent=1 // pred_region
      %84 = dma.done [#allocation5], 128
    $region29: #{tpu_custom_call.1} parent=1 // pred_fallthru
      _
    // Predicated region
    $region30: #{tpu_custom_call.1} parent=1 // pred_check
      _
    $region31: #{tpu_custom_call.1} parent=1 // pred_check_branch
      %86 = sbr.rel (0) target = $region33
    $region32: #{tpu_custom_call.1} parent=1 // pred_region
      %87 = dma.done [#allocation8], 2048
    $region33: #{tpu_custom_call.1} parent=1 // pred_fallthru
      _
    // Predicated region
    $region34: #{tpu_custom_call.1} parent=1 // pred_check
      _
    $region35: #{tpu_custom_call.1} parent=1 // pred_check_branch
      %89 = sbr.rel (0) target = $region37
    $region36: #{tpu_custom_call.1} parent=1 // pred_region
      %90 = dma.done [#allocation8], 16
    $region37: #{tpu_custom_call.1} parent=1 // pred_fallthru
      _
    // Predicated region
    $region38: #{tpu_custom_call.1} parent=1 // pred_check
      _
    $region39: #{tpu_custom_call.1} parent=1 // pred_check_branch
      %92 = sbr.rel (0) target = $region41
    $region40: #{tpu_custom_call.1} parent=1 // pred_region
      %93 = dma.done [#allocation11], 16
    $region41: #{tpu_custom_call.1} parent=1 // pred_fallthru
      _
    // Predicated region
    $region42: #{tpu_custom_call.1} parent=1 // pred_check
      _
    $region43: #{tpu_custom_call.1} parent=1 // pred_check_branch
      %95 = sbr.rel (0) target = $region45
    $region44: #{tpu_custom_call.1} parent=1 // pred_region
      %96 = dma.done [#allocation11], 16
    $region45: #{tpu_custom_call.1} parent=1 // pred_fallthru
      _
    // Predicated region
    $region46: #{tpu_custom_call.1} parent=1 // pred_check
      _
    $region47: #{tpu_custom_call.1} parent=1 // pred_check_branch
      %98 = sbr.rel (0) target = $region49
    $region48: #{tpu_custom_call.1} parent=1 // pred_region
      %99 = dma.done [#allocation14], 2048
    $region49: #{tpu_custom_call.1} parent=1 // pred_fallthru
      _
    %v100 = vld [vmem:[#allocation4] sm:$0xff]
    %v101 = vld [vmem:[#allocation7] sm:$0xff]
    %v102 = vld [vmem:[#allocation7 + $0x8] sm:$0xff]
    %v103 = vld [vmem:[#allocation7 + $0x10] sm:$0xff]
    %v104 = vld [vmem:[#allocation7 + $0x18] sm:$0xff]
    %v105 = vld [vmem:[#allocation7 + $0x20] sm:$0xff]
    %v106 = vld [vmem:[#allocation7 + $0x28] sm:$0xff]
    %v107 = vld [vmem:[#allocation7 + $0x30] sm:$0xff]
    %v108 = vld [vmem:[#allocation7 + $0x38] sm:$0xff]
    %v109 = vld [vmem:[#allocation7 + $0x40] sm:$0xff]
    %v110 = vld [vmem:[#allocation7 + $0x48] sm:$0xff]
    %v111 = vld [vmem:[#allocation7 + $0x50] sm:$0xff]
    %v112 = vld [vmem:[#allocation7 + $0x58] sm:$0xff]
    %v113 = vld [vmem:[#allocation7 + $0x60] sm:$0xff]
    %v114 = vld [vmem:[#allocation7 + $0x68] sm:$0xff]
    %v115 = vld [vmem:[#allocation7 + $0x70] sm:$0xff]
    %v116 = vld [vmem:[#allocation7 + $0x78] sm:$0xff]
    %v117 = vld [vmem:[#allocation9] sm:$0x1]
    %v118 = vld [vmem:[#allocation10] sm:$0x1]
    %v119 = vld [vmem:[#allocation12] sm:$0x1]
    %v120 = vld [vmem:[#allocation13] sm:$0xff]
    %v121 = vld [vmem:[#allocation13 + $0x8] sm:$0xff]
    %v122 = vld [vmem:[#allocation13 + $0x10] sm:$0xff]
    %v123 = vld [vmem:[#allocation13 + $0x18] sm:$0xff]
    %v124 = vld [vmem:[#allocation13 + $0x20] sm:$0xff]
    %v125 = vld [vmem:[#allocation13 + $0x28] sm:$0xff]
    %v126 = vld [vmem:[#allocation13 + $0x30] sm:$0xff]
    %v127 = vld [vmem:[#allocation13 + $0x38] sm:$0xff]
    %v128 = vld [vmem:[#allocation13 + $0x40] sm:$0xff]
    %v129 = vld [vmem:[#allocation13 + $0x48] sm:$0xff]
    %v130 = vld [vmem:[#allocation13 + $0x50] sm:$0xff]
    %v131 = vld [vmem:[#allocation13 + $0x58] sm:$0xff]
    %v132 = vld [vmem:[#allocation13 + $0x60] sm:$0xff]
    %v133 = vld [vmem:[#allocation13 + $0x68] sm:$0xff]
    %v134 = vld [vmem:[#allocation13 + $0x70] sm:$0xff]
    %v135 = vld [vmem:[#allocation13 + $0x78] sm:$0xff]
    %v137 = vlaneseq
    %v138 = vshrl.u32 %v137, 7
    %v139 = vsub.s32 0, %v138
    %v140 = vrot.slane %v117, %v139
    %142 = vmatprep.subr.mxu0 0.0
    %143 = vmatpush1.msra.mxu0 %v101
    %144 = vmatprep.subr.mxu0 0.0
    %145 = vmatpush1.msra.mxu0 %v102
    %146 = vmatprep.subr.mxu0 0.0
    %147 = vmatpush1.msra.mxu0 %v103
    %148 = vmatprep.subr.mxu0 0.0
    %149 = vmatpush1.msra.mxu0 %v104
    %150 = vmatprep.subr.mxu0 0.0
    %151 = vmatpush1.msra.mxu0 %v105
    %152 = vmatprep.subr.mxu0 0.0
    %153 = vmatpush1.msra.mxu0 %v106
    %154 = vmatprep.subr.mxu0 0.0
    %155 = vmatpush1.msra.mxu0 %v107
    %156 = vmatprep.subr.mxu0 0.0
    %157 = vmatpush1.msra.mxu0 %v108
    %158 = vmatprep.subr.mxu0 0.0
    %159 = vmatpush1.msra.mxu0 %v109
    %160 = vmatprep.subr.mxu0 0.0
    %161 = vmatpush1.msra.mxu0 %v110
    %162 = vmatprep.subr.mxu0 0.0
    %163 = vmatpush1.msra.mxu0 %v111
    %164 = vmatprep.subr.mxu0 0.0
    %165 = vmatpush1.msra.mxu0 %v112
    %166 = vmatprep.subr.mxu0 0.0
    %167 = vmatpush1.msra.mxu0 %v113
    %168 = vmatprep.subr.mxu0 0.0
    %169 = vmatpush1.msra.mxu0 %v114
    %170 = vmatprep.subr.mxu0 0.0
    %171 = vmatpush1.msra.mxu0 %v115
    %172 = vmatprep.subr.mxu0 0.0
    %173 = vmatpush1.msra.mxu0 %v116
    %174 = vmatprep.subr.mxu0 0.0
    %175 = vmatpush1.msra.mxu0 0.0
    %176 = vmatprep.subr.mxu0 0.0
    %177 = vmatpush1.msra.mxu0 0.0
    %178 = vmatprep.subr.mxu0 0.0
    %179 = vmatpush1.msra.mxu0 0.0
    %180 = vmatprep.subr.mxu0 0.0
    %181 = vmatpush1.msra.mxu0 0.0
    %182 = vmatprep.subr.mxu0 0.0
    %183 = vmatpush1.msra.mxu0 0.0
    %184 = vmatprep.subr.mxu0 0.0
    %185 = vmatpush1.msra.mxu0 0.0
    %186 = vmatprep.subr.mxu0 0.0
    %187 = vmatpush1.msra.mxu0 0.0
    %188 = vmatprep.subr.mxu0 0.0
    %189 = vmatpush1.msra.mxu0 0.0
    %190 = vmatprep.subr.mxu0 0.0
    %191 = vmatpush1.msra.mxu0 0.0
    %192 = vmatprep.subr.mxu0 0.0
    %193 = vmatpush1.msra.mxu0 0.0
    %194 = vmatprep.subr.mxu0 0.0
    %195 = vmatpush1.msra.mxu0 0.0
    %196 = vmatprep.subr.mxu0 0.0
    %197 = vmatpush1.msra.mxu0 0.0
    %198 = vmatprep.subr.mxu0 0.0
    %199 = vmatpush1.msra.mxu0 0.0
    %200 = vmatprep.subr.mxu0 0.0
    %201 = vmatpush1.msra.mxu0 0.0
    %202 = vmatprep.subr.mxu0 0.0
    %203 = vmatpush1.msra.mxu0 0.0
    %204 = vmatprep.subr.mxu0 0.0
    %205 = vmatpush1.msra.mxu0 0.0
    %206 = vmatprep.mubr.f32.mxu0 0.0
    %207 = vmatmul.mubr.f32.gmra.mrb[0].mxu0 %v100
    %v208 = vpop.f32.mrb[0].mxu0
    %v209 = vadd.f32 %v140, %v208
    %v210 = vpop.f32.mrb[0].mxu0
    %211 = vdwg.mxu0
    %v212 = vadd.f32 %v100, %v209
    %213 = vmatprep.subr.mxu0 0.0
    %214 = vmatpush1.msra.mxu0 %v120
    %215 = vmatprep.subr.mxu0 0.0
    %216 = vmatpush1.msra.mxu0 %v121
    %217 = vmatprep.subr.mxu0 0.0
    %218 = vmatpush1.msra.mxu0 %v122
    %219 = vmatprep.subr.mxu0 0.0
    %220 = vmatpush1.msra.mxu0 %v123
    %221 = vmatprep.subr.mxu0 0.0
    %222 = vmatpush1.msra.mxu0 %v124
    %223 = vmatprep.subr.mxu0 0.0
    %224 = vmatpush1.msra.mxu0 %v125
    %225 = vmatprep.subr.mxu0 0.0
    %226 = vmatpush1.msra.mxu0 %v126
    %227 = vmatprep.subr.mxu0 0.0
    %228 = vmatpush1.msra.mxu0 %v127
    %229 = vmatprep.subr.mxu0 0.0
    %230 = vmatpush1.msra.mxu0 %v128
    %231 = vmatprep.subr.mxu0 0.0
    %232 = vmatpush1.msra.mxu0 %v129
    %233 = vmatprep.subr.mxu0 0.0
    %234 = vmatpush1.msra.mxu0 %v130
    %235 = vmatprep.subr.mxu0 0.0
    %236 = vmatpush1.msra.mxu0 %v131
    %237 = vmatprep.subr.mxu0 0.0
    %238 = vmatpush1.msra.mxu0 %v132
    %239 = vmatprep.subr.mxu0 0.0
    %240 = vmatpush1.msra.mxu0 %v133
    %241 = vmatprep.subr.mxu0 0.0
    %242 = vmatpush1.msra.mxu0 %v134
    %243 = vmatprep.subr.mxu0 0.0
    %244 = vmatpush1.msra.mxu0 %v135
    %245 = vmatprep.subr.mxu0 0.0
    %246 = vmatpush1.msra.mxu0 0.0
    %247 = vmatprep.subr.mxu0 0.0
    %248 = vmatpush1.msra.mxu0 0.0
    %249 = vmatprep.subr.mxu0 0.0
    %250 = vmatpush1.msra.mxu0 0.0
    %251 = vmatprep.subr.mxu0 0.0
    %252 = vmatpush1.msra.mxu0 0.0
    %253 = vmatprep.subr.mxu0 0.0
    %254 = vmatpush1.msra.mxu0 0.0
    %255 = vmatprep.subr.mxu0 0.0
    %256 = vmatpush1.msra.mxu0 0.0
    %257 = vmatprep.subr.mxu0 0.0
    %258 = vmatpush1.msra.mxu0 0.0
    %259 = vmatprep.subr.mxu0 0.0
    %260 = vmatpush1.msra.mxu0 0.0
    %261 = vmatprep.subr.mxu0 0.0
    %262 = vmatpush1.msra.mxu0 0.0
    %263 = vmatprep.subr.mxu0 0.0
    %264 = vmatpush1.msra.mxu0 0.0
    %265 = vmatprep.subr.mxu0 0.0
    %266 = vmatpush1.msra.mxu0 0.0
    %267 = vmatprep.subr.mxu0 0.0
    %268 = vmatpush1.msra.mxu0 0.0
    %269 = vmatprep.subr.mxu0 0.0
    %270 = vmatpush1.msra.mxu0 0.0
    %271 = vmatprep.subr.mxu0 0.0
    %272 = vmatpush1.msra.mxu0 0.0
    %273 = vmatprep.subr.mxu0 0.0
    %274 = vmatpush1.msra.mxu0 0.0
    %275 = vmatprep.subr.mxu0 0.0
    %276 = vmatpush1.msra.mxu0 0.0
    %277 = vmatprep.mubr.f32.mxu0 0.0
    %278 = vmatmul.mubr.f32.gmra.mrb[0].mxu0 %v212
    %v279 = vpop.f32.mrb[0].mxu0
    %v280 = vadd.f32 0.0, %v279
    %v281 = vpop.f32.mrb[0].mxu0
    %282 = vdwg.mxu0
    %v283 = vsub.f32 %v212, %v280
    %v284 = vmul.f32 %v283, %v283
    %285 = vmatprep.subr.mxu0 0.0
    %286 = vmatpush1.msra.mxu0 %v120
    %287 = vmatprep.subr.mxu0 0.0
    %288 = vmatpush1.msra.mxu0 %v121
    %289 = vmatprep.subr.mxu0 0.0
    %290 = vmatpush1.msra.mxu0 %v122
    %291 = vmatprep.subr.mxu0 0.0
    %292 = vmatpush1.msra.mxu0 %v123
    %293 = vmatprep.subr.mxu0 0.0
    %294 = vmatpush1.msra.mxu0 %v124
    %295 = vmatprep.subr.mxu0 0.0
    %296 = vmatpush1.msra.mxu0 %v125
    %297 = vmatprep.subr.mxu0 0.0
    %298 = vmatpush1.msra.mxu0 %v126
    %299 = vmatprep.subr.mxu0 0.0
    %300 = vmatpush1.msra.mxu0 %v127
    %301 = vmatprep.subr.mxu0 0.0
    %302 = vmatpush1.msra.mxu0 %v128
    %303 = vmatprep.subr.mxu0 0.0
    %304 = vmatpush1.msra.mxu0 %v129
    %305 = vmatprep.subr.mxu0 0.0
    %306 = vmatpush1.msra.mxu0 %v130
    %307 = vmatprep.subr.mxu0 0.0
    %308 = vmatpush1.msra.mxu0 %v131
    %309 = vmatprep.subr.mxu0 0.0
    %310 = vmatpush1.msra.mxu0 %v132
    %311 = vmatprep.subr.mxu0 0.0
    %312 = vmatpush1.msra.mxu0 %v133
    %313 = vmatprep.subr.mxu0 0.0
    %314 = vmatpush1.msra.mxu0 %v134
    %315 = vmatprep.subr.mxu0 0.0
    %316 = vmatpush1.msra.mxu0 %v135
    %317 = vmatprep.subr.mxu0 0.0
    %318 = vmatpush1.msra.mxu0 0.0
    %319 = vmatprep.subr.mxu0 0.0
    %320 = vmatpush1.msra.mxu0 0.0
    %321 = vmatprep.subr.mxu0 0.0
    %322 = vmatpush1.msra.mxu0 0.0
    %323 = vmatprep.subr.mxu0 0.0
    %324 = vmatpush1.msra.mxu0 0.0
    %325 = vmatprep.subr.mxu0 0.0
    %326 = vmatpush1.msra.mxu0 0.0
    %327 = vmatprep.subr.mxu0 0.0
    %328 = vmatpush1.msra.mxu0 0.0
    %329 = vmatprep.subr.mxu0 0.0
    %330 = vmatpush1.msra.mxu0 0.0
    %331 = vmatprep.subr.mxu0 0.0
    %332 = vmatpush1.msra.mxu0 0.0
    %333 = vmatprep.subr.mxu0 0.0
    %334 = vmatpush1.msra.mxu0 0.0
    %335 = vmatprep.subr.mxu0 0.0
    %336 = vmatpush1.msra.mxu0 0.0
    %337 = vmatprep.subr.mxu0 0.0
    %338 = vmatpush1.msra.mxu0 0.0
    %339 = vmatprep.subr.mxu0 0.0
    %340 = vmatpush1.msra.mxu0 0.0
    %341 = vmatprep.subr.mxu0 0.0
    %342 = vmatpush1.msra.mxu0 0.0
    %343 = vmatprep.subr.mxu0 0.0
    %344 = vmatpush1.msra.mxu0 0.0
    %345 = vmatprep.subr.mxu0 0.0
    %346 = vmatpush1.msra.mxu0 0.0
    %347 = vmatprep.subr.mxu0 0.0
    %348 = vmatpush1.msra.mxu0 0.0
    %349 = vmatprep.mubr.f32.mxu0 0.0
    %350 = vmatmul.mubr.f32.gmra.mrb[0].mxu0 %v284
    %v351 = vpop.f32.mrb[0].mxu0
    %v352 = vadd.f32 1e-05, %v351
    %v353 = vpop.f32.mrb[0].mxu0
    %354 = vdwg.mxu0
    %v355 = vrsqrt.pop %v352
    %v356 = vmul.f32 %v283, %v355
    %v358 = vlaneseq
    %v359 = vshrl.u32 %v358, 7
    %v360 = vsub.s32 0, %v359
    %v361 = vrot.slane %v118, %v360
    %v363 = vmul.f32 %v356, %v361
    %v365 = vlaneseq
    %v366 = vshrl.u32 %v365, 7
    %v367 = vsub.s32 0, %v366
    %v368 = vrot.slane %v119, %v367
    %v370 = vadd.f32 %v363, %v368
    %v371 = vlaneseq
    %v372 = vshrl.u32 %v371, 7
    %v373 = vlaneseq
    %v374 = vand.u32 %v373, 127
    %s375 = smul.u32 0, 8
    %v376 = vstv %s375
    %v377 = vadd.s32 %v372, %v376
    %v378 = vmul.u32 %v377, 128
    %v379 = vadd.s32 %v378, %v374
    %s380 = sld [smem:[#allocation3]]
    %s381 = smul.u32 %s380, 2654435761
    %v382 = vstv %s381
    %v383 = vxor.u32 %v379, %v382
    %v384 = vshrl.u32 %v383, 16
    %v385 = vxor.u32 %v383, %v384
    %v386 = vmul.u32 %v385, 2246822507
    %v387 = vshrl.u32 %v386, 13
    %v388 = vxor.u32 %v386, %v387
    %v389 = vmul.u32 %v388, 3266489909
    %v390 = vshrl.u32 %v389, 16
    %v391 = vxor.u32 %v389, %v390
    %v392 = vand.u32 %v391, 2147483647
    %vm393 = vcmp.ge.s32.totalorder %v392, 214748364
    %v394 = vsel %vm393, %v370, 0.0
    %v395 = vmul.f32 %v394, 1.1111112
    %396 = vst [vmem:[#allocation15] sm:$0xff] %v395
    // Predicated region
    $region50: #{tpu_custom_call.1} parent=1 // pred_check
      _
    $region51: #{tpu_custom_call.1} parent=1 // pred_check_branch
      %398 = sbr.rel (0) target = $region53
    $region52: #{tpu_custom_call.1} parent=1 // pred_region
      %s400 = ssub.s32 128, 128
      %401 = vsyncadd [#allocation6], %s400
      %s403 = sshll.u32 [#allocation15], 4
      %s404 = int_to_ptr.vmem [resolvable:$true] %s403
      %406 = dma.vmem_to_hbm [thread:$0]  %s404, 128, %s7, [#allocation6]
    $region53: #{tpu_custom_call.1} parent=1 // pred_fallthru
      _
    // Predicated region
    $region54: #{tpu_custom_call.1} parent=1 // pred_check
      _
    $region55: #{tpu_custom_call.1} parent=1 // pred_check_branch
      %408 = sbr.rel (0) target = $region57
    $region56: #{tpu_custom_call.1} parent=1 // pred_region
      %409 = dma.done [#allocation6], 128
    $region57: #{tpu_custom_call.1} parent=1 // pred_fallthru
      _
    %410 = vsyncpa [#allocation5], 1
    %411 = vsyncpa [#allocation8], 1
    %412 = vsyncpa [#allocation11], 1
    %413 = vsyncpa [#allocation14], 1
    %414 = vsyncpa [#allocation6], 1

</llo_original>
